<compile_context>
chip_gen: v7x
topology: tpu7x:2x2x1
jax: 0.10.0
libtpu: 0.0.40
codegen_flags: <defaults>
</compile_context>

<pallas_src>
import jax
import jax.numpy as jnp
from jax.experimental import pallas as pl
from jax.experimental.pallas import tpu as pltpu


_LANES = 128          # vreg lane width
_TILE_ROWS = 8192     # rows per block for large B: 8192*128*4 B = 4 MiB (f32)


def _constant_fill_kernel(const_ref, o_ref):
    # const_ref: SMEM scalar parameter, shape (1,)
    # o_ref:     VMEM lane-dense output tile, shape (tile_rows, 128)
    # One VPU splat, then wide unmasked stores of full 128-lane rows.
    o_ref[...] = jnp.full(o_ref.shape, const_ref[0], dtype=o_ref.dtype)


def constant_forward(x, constant_output_value):
    """Equivalent of Constant.forward: returns (B, 1) filled with the parameter."""
    B = x.shape[0]  # shape-only use of x (glue, no data read)
    dtype = constant_output_value.dtype

    if B == 0:
        # Zero-sized blocks are invalid; empty result needs no kernel.
        return jnp.zeros((0, 1), dtype=dtype)

    # Lane-dense layout: B logical elements packed into rows of 128 lanes.
    rows = pl.cdiv(B, _LANES)

    if rows <= _TILE_ROWS:
        # Single grid step; block == full array dims, so no sublane-alignment
        # padding is needed for any dtype and no padded rows are written.
        tile_rows = rows
        grid = (1,)
    else:
        # Large B: 4 MiB (f32) blocks amortize the ~0.35 us/step grid
        # overhead; last block is partial (Pallas masks the boundary writes).
        tile_rows = _TILE_ROWS
        grid = (pl.cdiv(rows, _TILE_ROWS),)

    itemsize = jnp.dtype(dtype).itemsize
    cost = pl.CostEstimate(
        flops=0,
        transcendentals=0,
        bytes_accessed=rows * _LANES * itemsize + itemsize,
    )

    slab = pl.pallas_call(
        _constant_fill_kernel,
        out_shape=jax.ShapeDtypeStruct((rows, _LANES), dtype),
        grid=grid,
        in_specs=[pl.BlockSpec(memory_space=pltpu.SMEM)],
        out_specs=pl.BlockSpec((tile_rows, _LANES), lambda i: (i, 0)),
        compiler_params=pltpu.CompilerParams(
            dimension_semantics=("parallel",)),
        cost_estimate=cost,
    )(constant_output_value)

    # Layout plumbing only.
    if rows * _LANES == B:
        # Exact fit: pure reshape, no slice copy.
        return slab.reshape(B, 1)
    # Drop the (< 128-element) lane pad of the last row, present as (B, 1).
    return slab.reshape(-1)[:B].reshape(B, 1)


if __name__ == "__main__":
    key = jax.random.PRNGKey(0)

    # Deterministic parameter init (the nn.Parameter([constant_output_value])).
    constant_output_value = jnp.array([3.14], dtype=jnp.float32)

    # Small NCHW input; only the batch dim matters for the forward pass.
    x = jax.random.normal(key, (2, 4, 16, 16), dtype=jnp.float32)

    out = constant_forward(x, constant_output_value)
    out = jax.block_until_ready(out)

    # Reference check against the PyTorch semantics.
    expected = jnp.broadcast_to(constant_output_value, (x.shape[0], 1))
    assert out.shape == (x.shape[0], 1), out.shape
    assert out.dtype == jnp.float32, out.dtype
    assert jnp.allclose(out, expected), (out, expected)

    print("KERNEL_OK")
</pallas_src>

<mosaic_0001>
module attributes {stable_mosaic.version = 11 : i64} {
  func.func @_constant_fill_kernel(%arg0: i32, %arg1: memref<1xf32, #tpu.memory_space<smem>>, %arg2: memref<1x128xf32, #tpu.memory_space<vmem>>) attributes {dimension_semantics = [#tpu.dimension_semantics<parallel>], iteration_bounds = array<i64: 1>, scalar_prefetch = 0 : i64, scratch_operands = 0 : i64, tpu.core_type = #tpu.core_type<tc>, window_params = [{transform_indices = @transform_0, window_bounds = array<i64: 1>}, {transform_indices = @transform_1, window_bounds = array<i64: 1, 128>}]} {
    %c0 = arith.constant 0 : index
    %0 = memref.load %arg1[%c0] : memref<1xf32, #tpu.memory_space<smem>>
    %1 = vector.broadcast %0 : f32 to vector<1x128xf32>
    %c0_0 = arith.constant 0 : index
    %c0_1 = arith.constant 0 : index
    %2 = vector.load %arg2[%c0_0, %c0_1] : memref<1x128xf32, #tpu.memory_space<vmem>>, vector<1x128xf32>
    tpu.vector_store %arg2[%c0_0, %c0_1], %1 {strides = array<i32>} : memref<1x128xf32, #tpu.memory_space<vmem>>, vector<1x128xf32>,
    return
  }
  func.func @transform_0(%arg0: i32) -> i32 {
    %c0_i32 = arith.constant 0 : i32
    %c0_i32_0 = arith.constant 0 : i32
    return %c0_i32 : i32
  }
  func.func @transform_1(%arg0: i32) -> (i32, i32) {
    %c0_i32 = arith.constant 0 : i32
    %c0_i32_0 = arith.constant 0 : i32
    return %arg0, %c0_i32 : i32, i32
  }
}

</mosaic_0001>

<llo_original>
// kernel: tpu_custom_call.1
$region0: #{tpu_custom_call.1}
  #allocation0 [shape = 'u32[]', space=smem, size = 0x4, offset = 0x4, fixed_abs, tag = 'smem constant byte address 0x4 - core index']
  #allocation1 [shape = 'u32[144,128]{1,0:T(1,128)}', space=vmem, size = 0x12000, scoped, tag = 'internal scratch']
  #allocation2 [shape = 'f32[1]{0:T(128)S(6)}', space=smem, size = 0x200, scoped, tag = 'scoped memory for tpu_custom_call.1']
  %s0 = inlined_call_operand.<no memory space> [shape: f32[1], index: 0, kind: input, shape index: {}]
  %s1 = inlined_call_operand.hbm [shape: f32[1,128], index: 1, kind: output, shape index: {}]
  %s2 = sld [smem:[#allocation0]]
  $region14: #{tpu_custom_call.1} parent=0
    _
  %s4 = ssub.s32 1, %s2
  %s5 = scalar_select 0, %s4, %s2
  %6 = sst [smem:[#allocation2]] %s0
  $region1: #{tpu_custom_call.1} parent=0
    #allocation3 [shape = 'u8[512]{0}', space=vmem, size = 0x400, scoped, tag = 'output window, operand 0, single buffered']
    #allocation4 [shape = 's32[1]{0}', space=sflag, size = 0x4, scoped, tag = 'scoped memory for tpu_custom_call.1']
    %7 = vsyncpa [#allocation4], 0
    // Predicated region
    $region2: #{tpu_custom_call.1} parent=1 // pred_check
      _
    $region3: #{tpu_custom_call.1} parent=1 // pred_check_branch
      %9 = sbr.rel (0) target = $region5
    $region4: #{tpu_custom_call.1} parent=1 // pred_region
      _
    $region5: #{tpu_custom_call.1} parent=1 // pred_fallthru
      _
    %s10 = sld [smem:[#allocation2]]
    %v11 = vstv %s10
    %12 = vst [vmem:[#allocation3] sm:$0x1] %v11
    // Predicated region
    $region6: #{tpu_custom_call.1} parent=1 // pred_check
      _
    $region7: #{tpu_custom_call.1} parent=1 // pred_check_branch
      %14 = sbr.rel (0) target = $region9
    $region8: #{tpu_custom_call.1} parent=1 // pred_region
      %s16 = ssub.s32 16, 16
      %17 = vsyncadd [#allocation4], %s16
      %s19 = sshll.u32 [#allocation3], 4
      %s20 = int_to_ptr.vmem [resolvable:$true] %s19
      %22 = dma.vmem_to_hbm [thread:$0]  %s20, 16, %s1, [#allocation4]
    $region9: #{tpu_custom_call.1} parent=1 // pred_fallthru
      _
    // Predicated region
    $region10: #{tpu_custom_call.1} parent=1 // pred_check
      _
    $region11: #{tpu_custom_call.1} parent=1 // pred_check_branch
      %24 = sbr.rel (0) target = $region13
    $region12: #{tpu_custom_call.1} parent=1 // pred_region
      %25 = dma.done [#allocation4], 16
    $region13: #{tpu_custom_call.1} parent=1 // pred_fallthru
      _
    %26 = vsyncpa [#allocation4], 1

</llo_original>
